<compile_context>
chip_gen: v7x
topology: tpu7x:2x2x1
jax: 0.10.0
libtpu: 0.0.40
codegen_flags: <defaults>
</compile_context>

<pallas_src>
import functools

import jax
import jax.numpy as jnp
from jax.experimental import pallas as pl
from jax.experimental.pallas import tpu as pltpu


# ----------------------------------------------------------------------------
# Helpers
# ----------------------------------------------------------------------------
def _pick_tile(dim, target, base):
    """Largest multiple of `base` that divides `dim` and is <= target, else the full dim."""
    if dim <= target:
        return dim
    t = (target // base) * base
    while t >= base:
        if dim % t == 0:
            return t
        t -= base
    return dim


def _vmem_cap_bytes():
    try:
        return int(pltpu.get_tpu_info().vmem_capacity_bytes)
    except Exception:
        return 64 << 20   # conservative (v7x physical)


def _vmem_limit(block_bytes, scratch_bytes=0):
    """Scoped-VMEM limit derived from actual block sizes (double-buffered) + scratch."""
    need = 2 * int(block_bytes) + int(scratch_bytes) + (4 << 20)
    cap = max(32 << 20, _vmem_cap_bytes() - (8 << 20))
    return int(min(max(need, 32 << 20), cap))


# ----------------------------------------------------------------------------
# Kernel 1: linear  y = x @ wt + b   (wt already transposed: (d_in, d_out))
#   Fast path: whole weight VMEM-resident, no reduction grid axis, no scratch.
#   Fallback:  tiled reduction with f32 accumulator scratch (very large d_in).
# ----------------------------------------------------------------------------
def _linear_bias_kernel(x_ref, wt_ref, b_ref, o_ref):
    y = jnp.dot(x_ref[...], wt_ref[...], preferred_element_type=jnp.float32)
    o_ref[...] = (y + b_ref[...].astype(jnp.float32)).astype(o_ref.dtype)


def _linear_bias_acc_kernel(x_ref, wt_ref, b_ref, o_ref, acc_ref):
    k_idx = pl.program_id(2)

    @pl.when(k_idx == 0)
    def _():
        acc_ref[...] = jnp.zeros_like(acc_ref)

    acc_ref[...] += jnp.dot(x_ref[...], wt_ref[...], preferred_element_type=jnp.float32)

    @pl.when(k_idx == pl.num_programs(2) - 1)
    def _():
        o_ref[...] = (acc_ref[...] + b_ref[...].astype(jnp.float32)).astype(o_ref.dtype)


def linear(x, wt, b, *, tm_target=1024, tn_target=2048, tk_target=2048):
    """x: (M, d_in); wt: (d_in, d_out); b: (1, d_out) -> (M, d_out)."""
    m, d_in = x.shape
    d_out = wt.shape[1]
    itm = x.dtype.itemsize
    budget = 8 << 20   # keep the weight block <= ~8 MiB per pipeline copy

    tm = _pick_tile(m, tm_target, 8)
    tn = _pick_tile(d_out, tn_target, 128)
    tk = _pick_tile(d_in, tk_target, 128)
    # Shrink the reduction tile first (keeps the output lane width large).
    while tn * tk * itm > budget and tk > 128:
        new_tk = _pick_tile(d_in, tk - 128, 128)
        if new_tk >= tk:
            break
        tk = new_tk
    while tn * tk * itm > budget and tn > 128:
        new_tn = _pick_tile(d_out, tn - 128, 128)
        if new_tn >= tn:
            break
        tn = new_tn

    n_k = d_in // tk
    block_bytes = (tm * tk + tk * tn + tn + tm * tn) * itm

    if n_k == 1:
        # Whole reduction in one dot; weight block index is constant -> stays resident.
        return pl.pallas_call(
            _linear_bias_kernel,
            out_shape=jax.ShapeDtypeStruct((m, d_out), x.dtype),
            grid_spec=pltpu.PrefetchScalarGridSpec(
                num_scalar_prefetch=0,
                grid=(m // tm, d_out // tn),
                in_specs=[
                    pl.BlockSpec((tm, tk), lambda i, j: (i, 0)),
                    pl.BlockSpec((tk, tn), lambda i, j: (0, j)),
                    pl.BlockSpec((1, tn), lambda i, j: (0, j)),
                ],
                out_specs=pl.BlockSpec((tm, tn), lambda i, j: (i, j)),
            ),
            compiler_params=pltpu.CompilerParams(
                dimension_semantics=("parallel", "parallel"),
                vmem_limit_bytes=_vmem_limit(block_bytes),
            ),
        )(x, wt, b)

    # Large-d_in fallback: tiled reduction, f32 accumulator scratch, reduction axis last.
    return pl.pallas_call(
        _linear_bias_acc_kernel,
        out_shape=jax.ShapeDtypeStruct((m, d_out), x.dtype),
        grid_spec=pltpu.PrefetchScalarGridSpec(
            num_scalar_prefetch=0,
            grid=(m // tm, d_out // tn, n_k),
            in_specs=[
                pl.BlockSpec((tm, tk), lambda i, j, kk: (i, kk)),
                pl.BlockSpec((tk, tn), lambda i, j, kk: (kk, j)),
                pl.BlockSpec((1, tn), lambda i, j, kk: (0, j)),
            ],
            out_specs=pl.BlockSpec((tm, tn), lambda i, j, kk: (i, j)),
            scratch_shapes=[pltpu.VMEM((tm, tn), jnp.float32)],
        ),
        compiler_params=pltpu.CompilerParams(
            dimension_semantics=("parallel", "parallel", "arbitrary"),
            vmem_limit_bytes=_vmem_limit(block_bytes, scratch_bytes=tm * tn * 4),
        ),
    )(x, wt, b)


# ----------------------------------------------------------------------------
# Kernel 2: flash attention (online softmax over a KV grid axis, all heads per step).
#   Inputs keep the (B, L, d_model) layout; heads are static column slices.
#   Outputs: attention (B, Lq, d_model) and per-head logsumexp (B, Lq, H).
# ----------------------------------------------------------------------------
def _flash_attn_kernel(q_ref, k_ref, v_ref, o_ref, lse_ref, m_ref, l_ref, acc_ref,
                       *, n_heads, d_head, scale):
    kv = pl.program_id(2)

    @pl.when(kv == 0)
    def _():
        m_ref[...] = jnp.full_like(m_ref, -jnp.inf)
        l_ref[...] = jnp.zeros_like(l_ref)
        acc_ref[...] = jnp.zeros_like(acc_ref)

    q_all = q_ref[0]          # (tq,  d_model)
    k_all = k_ref[0]          # (tkv, d_model)
    v_all = v_ref[0]          # (tkv, d_model)

    # Static per-head loop: each head's (tq, tkv) temporaries die before the next head;
    # per-head state lives in VMEM scratch (no Python-list live-range blowup, no concat).
    # NOTE: exp on the EUP is the likely binding slot once the probs write is gone.
    for h in range(n_heads):
        lo = h * d_head
        qh = q_all[:, lo:lo + d_head]
        kh = k_all[:, lo:lo + d_head]
        vh = v_all[:, lo:lo + d_head]

        # scores = qh @ kh^T (contract on d_head, no materialized transpose); scale in f32.
        s = jax.lax.dot_general(qh, kh, (((1,), (1,)), ((), ())),
                                preferred_element_type=jnp.float32) * scale   # (tq, tkv)

        m_prev = m_ref[:, h:h + 1]                                            # (tq, 1)
        m_new = jnp.maximum(m_prev, jnp.max(s, axis=-1, keepdims=True))
        alpha = jnp.exp(m_prev - m_new)
        p = jnp.exp(s - m_new)                                                # (tq, tkv) f32
        l_ref[:, h:h + 1] = alpha * l_ref[:, h:h + 1] + jnp.sum(p, axis=-1, keepdims=True)
        pv = jnp.dot(p.astype(v_all.dtype), vh, preferred_element_type=jnp.float32)
        acc_ref[:, lo:lo + d_head] = alpha * acc_ref[:, lo:lo + d_head] + pv
        m_ref[:, h:h + 1] = m_new

    @pl.when(kv == pl.num_programs(2) - 1)
    def _():
        # Normalize per head inside the f32 scratch, then one lane-dense (tq, d_model) store.
        for h in range(n_heads):
            lo = h * d_head
            inv = pl.reciprocal(l_ref[:, h:h + 1], approx=True)               # EUP
            acc_ref[:, lo:lo + d_head] = acc_ref[:, lo:lo + d_head] * inv
        o_ref[0] = acc_ref[...].astype(o_ref.dtype)
        lse_ref[0] = (m_ref[...] + jnp.log(l_ref[...])).astype(lse_ref.dtype)


def _run_flash(operands, qkv_index_maps, b, lq, lk, d_model, n_heads, dtype,
               *, tq_target=256, tkv_target=512):
    d_head = d_model // n_heads
    scale = 1.0 / float(d_head) ** 0.5
    tq = _pick_tile(lq, tq_target, 8)
    tkv = _pick_tile(lk, tkv_target, 8)
    q_map, k_map, v_map = qkv_index_maps

    itm = jnp.dtype(dtype).itemsize
    block_bytes = (tq + 2 * tkv) * d_model * itm + tq * d_model * itm + tq * n_heads * 4
    scratch_bytes = (tq * d_model + 2 * tq * max(n_heads, 128)) * 4

    kernel = functools.partial(_flash_attn_kernel,
                               n_heads=n_heads, d_head=d_head, scale=scale)
    return pl.pallas_call(
        kernel,
        out_shape=(
            jax.ShapeDtypeStruct((b, lq, d_model), dtype),
            jax.ShapeDtypeStruct((b, lq, n_heads), jnp.float32),
        ),
        grid_spec=pltpu.PrefetchScalarGridSpec(
            num_scalar_prefetch=0,
            grid=(b, lq // tq, lk // tkv),
            in_specs=[
                pl.BlockSpec((1, tq, d_model), q_map),
                pl.BlockSpec((1, tkv, d_model), k_map),
                pl.BlockSpec((1, tkv, d_model), v_map),
            ],
            out_specs=[
                pl.BlockSpec((1, tq, d_model), lambda bi, qi, ki: (bi, qi, 0)),
                pl.BlockSpec((1, tq, n_heads), lambda bi, qi, ki: (bi, qi, 0)),
            ],
            scratch_shapes=[
                pltpu.VMEM((tq, n_heads), jnp.float32),   # running max  m
                pltpu.VMEM((tq, n_heads), jnp.float32),   # running sum  l
                pltpu.VMEM((tq, d_model), jnp.float32),   # output accumulator
            ],
        ),
        compiler_params=pltpu.CompilerParams(
            dimension_semantics=("parallel", "parallel", "arbitrary"),
            vmem_limit_bytes=_vmem_limit(block_bytes, scratch_bytes=scratch_bytes),
        ),
    )(*operands)


def flash_attention(q, k, v, *, n_heads):
    b, lq, d_model = q.shape
    lk = k.shape[1]
    maps = (lambda bi, qi, ki: (bi, qi, 0),
            lambda bi, qi, ki: (bi, ki, 0),
            lambda bi, qi, ki: (bi, ki, 0))
    return _run_flash((q, k, v), maps, b, lq, lk, d_model, n_heads, q.dtype)


def flash_attention_packed(qkv, *, n_heads):
    """qkv: (B, L, 3*d_model) column-packed [Q | K | V]; no split copies hit HBM."""
    b, l, dm3 = qkv.shape
    d_model = dm3 // 3
    maps = (lambda bi, qi, ki: (bi, qi, 0),
            lambda bi, qi, ki: (bi, ki, 1),
            lambda bi, qi, ki: (bi, ki, 2))
    return _run_flash((qkv, qkv, qkv), maps, b, l, l, d_model, n_heads, qkv.dtype)


# ----------------------------------------------------------------------------
# Kernel 3 (optional): attention probabilities, recomputed from Q, K and lse.
#   Fully tiled over (B, Lq, Lk); only used when the caller asks for probs.
# ----------------------------------------------------------------------------
def _attn_probs_kernel(q_ref, k_ref, lse_ref, p_ref, *, n_heads, d_head, scale):
    q_all = q_ref[0]
    k_all = k_ref[0]
    lse = lse_ref[0]                                   # (tq, n_heads) f32
    for h in range(n_heads):
        lo = h * d_head
        s = jax.lax.dot_general(q_all[:, lo:lo + d_head], k_all[:, lo:lo + d_head],
                                (((1,), (1,)), ((), ())),
                                preferred_element_type=jnp.float32) * scale
        p_ref[0, h] = jnp.exp(s - lse[:, h:h + 1]).astype(p_ref.dtype)


def _run_probs(operands, qk_index_maps, lse, b, lq, lk, d_model, n_heads, probs_dtype,
               *, tq_target=256, tkv_target=512):
    d_head = d_model // n_heads
    scale = 1.0 / float(d_head) ** 0.5
    tq = _pick_tile(lq, tq_target, 8)
    tkv = _pick_tile(lk, tkv_target, 128)
    q_map, k_map = qk_index_maps

    itm = operands[0].dtype.itemsize
    pitm = jnp.dtype(probs_dtype).itemsize
    block_bytes = (tq + tkv) * d_model * itm + tq * n_heads * 4 + n_heads * tq * tkv * pitm

    kernel = functools.partial(_attn_probs_kernel,
                               n_heads=n_heads, d_head=d_head, scale=scale)
    return pl.pallas_call(
        kernel,
        out_shape=jax.ShapeDtypeStruct((b, n_heads, lq, lk), probs_dtype),
        grid_spec=pltpu.PrefetchScalarGridSpec(
            num_scalar_prefetch=0,
            grid=(b, lq // tq, lk // tkv),
            in_specs=[
                pl.BlockSpec((1, tq, d_model), q_map),
                pl.BlockSpec((1, tkv, d_model), k_map),
                pl.BlockSpec((1, tq, n_heads), lambda bi, qi, ki: (bi, qi, 0)),
            ],
            out_specs=pl.BlockSpec((1, n_heads, tq, tkv), lambda bi, qi, ki: (bi, 0, qi, ki)),
        ),
        compiler_params=pltpu.CompilerParams(
            dimension_semantics=("parallel", "parallel", "parallel"),
            vmem_limit_bytes=_vmem_limit(block_bytes),
        ),
    )(*operands, lse)


def attention_probs(q, k, lse, *, n_heads, probs_dtype=None):
    b, lq, d_model = q.shape
    lk = k.shape[1]
    maps = (lambda bi, qi, ki: (bi, qi, 0), lambda bi, qi, ki: (bi, ki, 0))
    return _run_probs((q, k), maps, lse, b, lq, lk, d_model, n_heads, probs_dtype or q.dtype)


def attention_probs_packed(qkv, lse, *, n_heads, probs_dtype=None):
    b, l, dm3 = qkv.shape
    d_model = dm3 // 3
    maps = (lambda bi, qi, ki: (bi, qi, 0), lambda bi, qi, ki: (bi, ki, 1))
    return _run_probs((qkv, qkv), maps, lse, b, l, l, d_model, n_heads, probs_dtype or qkv.dtype)


# ----------------------------------------------------------------------------
# MultiHeadAttention forward
# ----------------------------------------------------------------------------
def multi_head_attention(params, q, k, v, mask=None, *, return_probs=True, probs_dtype=None):
    """q: (B, Lq, d_model); k, v: (B, Lk, d_model).
    Returns (out (B, Lq, d_model), probs (B, H, Lq, Lk) or None)."""
    # TODO(synk): decoder / key-padding mask path is not implemented in the kernels.
    if mask is not None:
        raise NotImplementedError("mask is not supported by the Pallas kernels")

    b, lq, d_model = q.shape
    lk = k.shape[1]
    n_heads = params["n_heads"]

    packed = (q is k) and (k is v) and (d_model % 128 == 0)
    Q = K = qkv = None

    if packed:
        # Self-attention fast path: one matmul over pre-concatenated (d_model, 3*d_model)
        # weights; the attention kernels read the packed result via column blocks.
        qkv = linear(q.reshape(b * lq, d_model), params["wqkv_t"], params["bqkv"])
        qkv = qkv.reshape(b, lq, 3 * d_model)
        attn, lse = flash_attention_packed(qkv, n_heads=n_heads)
    else:
        if (q is k) and (k is v):
            # Small d_model fallback: fused projection, then split (column blocks need %128).
            qkv2 = linear(q.reshape(b * lq, d_model), params["wqkv_t"], params["bqkv"])
            Q = qkv2[:, :d_model].reshape(b, lq, d_model)
            K = qkv2[:, d_model:2 * d_model].reshape(b, lk, d_model)
            V = qkv2[:, 2 * d_model:].reshape(b, lk, d_model)
        elif k is v:
            Q = linear(q.reshape(b * lq, d_model), params["wq_t"], params["bq"]).reshape(b, lq, d_model)
            kvp = linear(k.reshape(b * lk, d_model), params["wkv_t"], params["bkv"])
            K = kvp[:, :d_model].reshape(b, lk, d_model)
            V = kvp[:, d_model:].reshape(b, lk, d_model)
        else:
            Q = linear(q.reshape(b * lq, d_model), params["wq_t"], params["bq"]).reshape(b, lq, d_model)
            K = linear(k.reshape(b * lk, d_model), params["wk_t"], params["bk"]).reshape(b, lk, d_model)
            V = linear(v.reshape(b * lk, d_model), params["wv_t"], params["bv"]).reshape(b, lk, d_model)
        attn, lse = flash_attention(Q, K, V, n_heads=n_heads)

    out = linear(attn.reshape(b * lq, d_model), params["wo_t"], params["bo"]).reshape(b, lq, d_model)

    if not return_probs:
        return out, None
    if packed:
        probs = attention_probs_packed(qkv, lse, n_heads=n_heads, probs_dtype=probs_dtype)
    else:
        probs = attention_probs(Q, K, lse, n_heads=n_heads, probs_dtype=probs_dtype)
    return out, probs


def init_params(key, d_model, n_heads):
    ks = jax.random.split(key, 8)
    bound = 1.0 / float(d_model) ** 0.5

    def w_t(k):
        # PyTorch nn.Linear weight is (d_out, d_in); store W^T once (y = x @ W^T + b).
        w = jax.random.uniform(k, (d_model, d_model), jnp.float32, -bound, bound)
        return w.T

    def bias(k):
        return jax.random.uniform(k, (1, d_model), jnp.float32, -bound, bound)

    wq_t, wk_t, wv_t, wo_t = w_t(ks[0]), w_t(ks[1]), w_t(ks[2]), w_t(ks[3])
    bq, bk, bv, bo = bias(ks[4]), bias(ks[5]), bias(ks[6]), bias(ks[7])
    return {
        "n_heads": n_heads,
        "wq_t": wq_t, "wk_t": wk_t, "wv_t": wv_t, "wo_t": wo_t,
        "bq": bq, "bk": bk, "bv": bv, "bo": bo,
        # Pre-concatenated along the output dim (built once at init; no per-call stacks).
        "wqkv_t": jnp.concatenate([wq_t, wk_t, wv_t], axis=1),   # (dm, 3*dm)
        "bqkv": jnp.concatenate([bq, bk, bv], axis=1),           # (1, 3*dm)
        "wkv_t": jnp.concatenate([wk_t, wv_t], axis=1),          # (dm, 2*dm)
        "bkv": jnp.concatenate([bk, bv], axis=1),                # (1, 2*dm)
    }


# Pure-JAX reference (correctness spot-check in __main__).
def _reference(params, q, k, v):
    n_heads = params["n_heads"]
    b, lq, d_model = q.shape
    lk = k.shape[1]
    d_head = d_model // n_heads

    def lin(x, wt, bias):
        return x @ wt + bias.reshape(1, 1, -1)

    Q = lin(q, params["wq_t"], params["bq"])
    K = lin(k, params["wk_t"], params["bk"])
    V = lin(v, params["wv_t"], params["bv"])
    Qh = Q.reshape(b, lq, n_heads, d_head).transpose(0, 2, 1, 3)
    Kh = K.reshape(b, lk, n_heads, d_head).transpose(0, 2, 1, 3)
    Vh = V.reshape(b, lk, n_heads, d_head).transpose(0, 2, 1, 3)
    s = jnp.einsum("bhqd,bhkd->bhqk", Qh, Kh) / jnp.sqrt(jnp.float32(d_head))
    p = jax.nn.softmax(s, axis=-1)
    a = jnp.einsum("bhqk,bhkd->bhqd", p, Vh)
    a = a.transpose(0, 2, 1, 3).reshape(b, lq, d_model)
    out = lin(a, params["wo_t"], params["bo"])
    return out, p


if __name__ == "__main__":
    batch, seq, d_model, n_heads = 2, 8, 128, 4

    key = jax.random.PRNGKey(0)
    kp, kq, kk, kv = jax.random.split(key, 4)
    params = init_params(kp, d_model, n_heads)

    q = jax.random.normal(kq, (batch, seq, d_model), jnp.float32)
    k = jax.random.normal(kk, (batch, seq, d_model), jnp.float32)
    v = jax.random.normal(kv, (batch, seq, d_model), jnp.float32)

    # Cross-attention path (distinct q/k/v -> separate projections).
    out, probs = multi_head_attention(params, q, k, v)
    out = jax.block_until_ready(out)
    probs = jax.block_until_ready(probs)
    assert out.shape == (batch, seq, d_model)
    assert probs.shape == (batch, n_heads, seq, seq)
    ref_out, ref_probs = _reference(params, q, k, v)
    assert jnp.allclose(probs, ref_probs, atol=1e-2, rtol=1e-2)
    assert jnp.allclose(out, ref_out, atol=1e-2, rtol=1e-2)

    # Self-attention fast path (q is k is v -> fused QKV projection + packed attention).
    out_s, probs_s = multi_head_attention(params, q, q, q)
    out_s = jax.block_until_ready(out_s)
    probs_s = jax.block_until_ready(probs_s)
    ref_out_s, ref_probs_s = _reference(params, q, q, q)
    assert jnp.allclose(probs_s, ref_probs_s, atol=1e-2, rtol=1e-2)
    assert jnp.allclose(out_s, ref_out_s, atol=1e-2, rtol=1e-2)

    print("KERNEL_OK")
</pallas_src>

<mosaic_0001>
module attributes {stable_mosaic.version = 11 : i64} {
  func.func @_linear_bias_kernel(%arg0: i32, %arg1: i32, %arg2: memref<16x128xf32, #tpu.memory_space<vmem>>, %arg3: memref<128x128xf32, #tpu.memory_space<vmem>>, %arg4: memref<1x128xf32, #tpu.memory_space<vmem>>, %arg5: memref<16x128xf32, #tpu.memory_space<vmem>>) attributes {dimension_semantics = [#tpu.dimension_semantics<parallel>, #tpu.dimension_semantics<parallel>], iteration_bounds = array<i64: 1, 1>, scalar_prefetch = 0 : i64, scratch_operands = 0 : i64, tpu.core_type = #tpu.core_type<tc>, window_params = [{transform_indices = @transform_0, window_bounds = array<i64: 16, 128>}, {transform_indices = @transform_1, window_bounds = array<i64: 128, 128>}, {transform_indices = @transform_2, window_bounds = array<i64: 1, 128>}, {transform_indices = @transform_3, window_bounds = array<i64: 16, 128>}]} {
    %c0 = arith.constant 0 : index
    %c0_0 = arith.constant 0 : index
    %0 = vector.load %arg2[%c0, %c0_0] : memref<16x128xf32, #tpu.memory_space<vmem>>, vector<16x128xf32>
    %c0_1 = arith.constant 0 : index
    %c0_2 = arith.constant 0 : index
    %1 = vector.load %arg3[%c0_1, %c0_2] : memref<128x128xf32, #tpu.memory_space<vmem>>, vector<128x128xf32>
    %cst = arith.constant dense<0.000000e+00> : vector<16x128xf32>
    %2 = tpu.matmul %0, %1, %cst {dimension_numbers = #tpu.dot_dimension_numbers<[1], [0], [0], [1], [0, 0, 1, 1], [], []>} : vector<16x128xf32>, vector<128x128xf32>, vector<16x128xf32> -> vector<16x128xf32>
    %c0_3 = arith.constant 0 : index
    %c0_4 = arith.constant 0 : index
    %3 = vector.load %arg4[%c0_3, %c0_4] : memref<1x128xf32, #tpu.memory_space<vmem>>, vector<1x128xf32>
    %4 = vector.broadcast %3 : vector<1x128xf32> to vector<16x128xf32>
    %5 = arith.addf %2, %4 : vector<16x128xf32>
    %c0_5 = arith.constant 0 : index
    %c0_6 = arith.constant 0 : index
    %6 = vector.load %arg5[%c0_5, %c0_6] : memref<16x128xf32, #tpu.memory_space<vmem>>, vector<16x128xf32>
    tpu.vector_store %arg5[%c0_5, %c0_6], %5 {strides = array<i32>} : memref<16x128xf32, #tpu.memory_space<vmem>>, vector<16x128xf32>,
    return
  }
  func.func @transform_0(%arg0: i32, %arg1: i32) -> (i32, i32) {
    %c0_i32 = arith.constant 0 : i32
    %c0_i32_0 = arith.constant 0 : i32
    return %arg0, %c0_i32 : i32, i32
  }
  func.func @transform_1(%arg0: i32, %arg1: i32) -> (i32, i32) {
    %c0_i32 = arith.constant 0 : i32
    %c0_i32_0 = arith.constant 0 : i32
    return %c0_i32, %arg1 : i32, i32
  }
  func.func @transform_2(%arg0: i32, %arg1: i32) -> (i32, i32) {
    %c0_i32 = arith.constant 0 : i32
    %c0_i32_0 = arith.constant 0 : i32
    return %c0_i32, %arg1 : i32, i32
  }
  func.func @transform_3(%arg0: i32, %arg1: i32) -> (i32, i32) {
    %c0_i32 = arith.constant 0 : i32
    return %arg0, %arg1 : i32, i32
  }
}

</mosaic_0001>

<llo_original>
// kernel: tpu_custom_call.1
$region0: #{tpu_custom_call.1}
  #allocation0 [shape = 'u32[]', space=smem, size = 0x4, offset = 0x4, fixed_abs, tag = 'smem constant byte address 0x4 - core index']
  #allocation1 [shape = 'u32[144,128]{1,0:T(1,128)}', space=vmem, size = 0x12000, scoped, tag = 'internal scratch']
  %s0 = inlined_call_operand.hbm [shape: f32[16,128], index: 0, kind: input, shape index: {}]
  %s1 = inlined_call_operand.hbm [shape: f32[128,128], index: 1, kind: input, shape index: {}]
  %s2 = inlined_call_operand.vmem [shape: f32[1,128], index: 2, kind: input, shape index: {}]
  %s3 = inlined_call_operand.hbm [shape: f32[16,128], index: 3, kind: output, shape index: {}]
  %s4 = sld [smem:[#allocation0]]
  $region30: #{tpu_custom_call.1} parent=0
    _
  %s6 = ssub.s32 1, %s4
  %s7 = scalar_select 0, %s6, %s4
  $region1: #{tpu_custom_call.1} parent=0
    #allocation2 [shape = 'u8[8192]{0}', space=vmem, size = 0x2000, scoped, tag = 'input window, operand 0, single buffered']
    #allocation3 [shape = 's32[1]{0}', space=sflag, size = 0x4, scoped, tag = 'scoped memory for tpu_custom_call.1']
    #allocation4 [shape = 's32[1]{0}', space=sflag, size = 0x4, scoped, tag = 'scoped memory for tpu_custom_call.1']
    #allocation5 [shape = 'u8[65536]{0}', space=vmem, size = 0x10000, scoped, tag = 'input window, operand 1, single buffered']
    #allocation6 [shape = 's32[1]{0}', space=sflag, size = 0x4, scoped, tag = 'scoped memory for tpu_custom_call.1']
    #allocation7 [shape = 'u8[8192]{0}', space=vmem, size = 0x2000, scoped, tag = 'output window, operand 0, single buffered']
    %8 = vsyncpa [#allocation3], 0
    %9 = vsyncpa [#allocation6], 0
    %10 = vsyncpa [#allocation4], 0
    // Predicated region
    $region2: #{tpu_custom_call.1} parent=1 // pred_check
      _
    $region3: #{tpu_custom_call.1} parent=1 // pred_check_branch
      %12 = sbr.rel (0) target = $region5
    $region4: #{tpu_custom_call.1} parent=1 // pred_region
      %s14 = ssub.s32 256, 256
      %15 = vsyncadd [#allocation3], %s14
      %s16 = sshll.u32 [#allocation2], 4
      %s17 = int_to_ptr.vmem [resolvable:$true] %s16
      %22 = dma.hbm_to_vmem [thread:$0]  %s0, 256, %s17, [#allocation3], 128, 128, 8
    $region5: #{tpu_custom_call.1} parent=1 // pred_fallthru
      _
    // Predicated region
    $region6: #{tpu_custom_call.1} parent=1 // pred_check
      _
    $region7: #{tpu_custom_call.1} parent=1 // pred_check_branch
      %24 = sbr.rel (0) target = $region9
    $region8: #{tpu_custom_call.1} parent=1 // pred_region
      %s26 = ssub.s32 2048, 2048
      %27 = vsyncadd [#allocation6], %s26
      %s28 = sshll.u32 [#allocation5], 4
      %s29 = int_to_ptr.vmem [resolvable:$true] %s28
      %34 = dma.hbm_to_vmem [thread:$0]  %s1, 2048, %s29, [#allocation6], 128, 128, 8
    $region9: #{tpu_custom_call.1} parent=1 // pred_fallthru
      _
    // Predicated region
    $region10: #{tpu_custom_call.1} parent=1 // pred_check
      _
    $region11: #{tpu_custom_call.1} parent=1 // pred_check_branch
      %36 = sbr.rel (0) target = $region13
    $region12: #{tpu_custom_call.1} parent=1 // pred_region
      _
    $region13: #{tpu_custom_call.1} parent=1 // pred_fallthru
      _
    // Predicated region
    $region14: #{tpu_custom_call.1} parent=1 // pred_check
      _
    $region15: #{tpu_custom_call.1} parent=1 // pred_check_branch
      %38 = sbr.rel (0) target = $region17
    $region16: #{tpu_custom_call.1} parent=1 // pred_region
      %39 = dma.done [#allocation3], 256
    $region17: #{tpu_custom_call.1} parent=1 // pred_fallthru
      _
    // Predicated region
    $region18: #{tpu_custom_call.1} parent=1 // pred_check
      _
    $region19: #{tpu_custom_call.1} parent=1 // pred_check_branch
      %41 = sbr.rel (0) target = $region21
    $region20: #{tpu_custom_call.1} parent=1 // pred_region
      %42 = dma.done [#allocation6], 2048
    $region21: #{tpu_custom_call.1} parent=1 // pred_fallthru
      _
    %v43 = vld [vmem:[#allocation2] sm:$0xff]
    %v44 = vld [vmem:[#allocation2 + $0x8] sm:$0xff]
    %v45 = vld [vmem:[#allocation5] sm:$0xff]
    %v46 = vld [vmem:[#allocation5 + $0x8] sm:$0xff]
    %v47 = vld [vmem:[#allocation5 + $0x10] sm:$0xff]
    %v48 = vld [vmem:[#allocation5 + $0x18] sm:$0xff]
    %v49 = vld [vmem:[#allocation5 + $0x20] sm:$0xff]
    %v50 = vld [vmem:[#allocation5 + $0x28] sm:$0xff]
    %v51 = vld [vmem:[#allocation5 + $0x30] sm:$0xff]
    %v52 = vld [vmem:[#allocation5 + $0x38] sm:$0xff]
    %v53 = vld [vmem:[#allocation5 + $0x40] sm:$0xff]
    %v54 = vld [vmem:[#allocation5 + $0x48] sm:$0xff]
    %v55 = vld [vmem:[#allocation5 + $0x50] sm:$0xff]
    %v56 = vld [vmem:[#allocation5 + $0x58] sm:$0xff]
    %v57 = vld [vmem:[#allocation5 + $0x60] sm:$0xff]
    %v58 = vld [vmem:[#allocation5 + $0x68] sm:$0xff]
    %v59 = vld [vmem:[#allocation5 + $0x70] sm:$0xff]
    %v60 = vld [vmem:[#allocation5 + $0x78] sm:$0xff]
    %v61 = vld [vmem:[%s2] sm:$0x1]
    %v63 = vlaneseq
    %v64 = vshrl.u32 %v63, 7
    %v65 = vsub.s32 0, %v64
    %v66 = vrot.slane %v61, %v65
    %68 = vmatprep.subr.mxu0 0.0
    %69 = vmatpush1.msra.mxu0 %v45
    %70 = vmatprep.subr.mxu0 0.0
    %71 = vmatpush1.msra.mxu0 %v46
    %72 = vmatprep.subr.mxu0 0.0
    %73 = vmatpush1.msra.mxu0 %v47
    %74 = vmatprep.subr.mxu0 0.0
    %75 = vmatpush1.msra.mxu0 %v48
    %76 = vmatprep.subr.mxu0 0.0
    %77 = vmatpush1.msra.mxu0 %v49
    %78 = vmatprep.subr.mxu0 0.0
    %79 = vmatpush1.msra.mxu0 %v50
    %80 = vmatprep.subr.mxu0 0.0
    %81 = vmatpush1.msra.mxu0 %v51
    %82 = vmatprep.subr.mxu0 0.0
    %83 = vmatpush1.msra.mxu0 %v52
    %84 = vmatprep.subr.mxu0 0.0
    %85 = vmatpush1.msra.mxu0 %v53
    %86 = vmatprep.subr.mxu0 0.0
    %87 = vmatpush1.msra.mxu0 %v54
    %88 = vmatprep.subr.mxu0 0.0
    %89 = vmatpush1.msra.mxu0 %v55
    %90 = vmatprep.subr.mxu0 0.0
    %91 = vmatpush1.msra.mxu0 %v56
    %92 = vmatprep.subr.mxu0 0.0
    %93 = vmatpush1.msra.mxu0 %v57
    %94 = vmatprep.subr.mxu0 0.0
    %95 = vmatpush1.msra.mxu0 %v58
    %96 = vmatprep.subr.mxu0 0.0
    %97 = vmatpush1.msra.mxu0 %v59
    %98 = vmatprep.subr.mxu0 0.0
    %99 = vmatpush1.msra.mxu0 %v60
    %100 = vmatprep.subr.mxu0 0.0
    %101 = vmatpush1.msra.mxu0 0.0
    %102 = vmatprep.subr.mxu0 0.0
    %103 = vmatpush1.msra.mxu0 0.0
    %104 = vmatprep.subr.mxu0 0.0
    %105 = vmatpush1.msra.mxu0 0.0
    %106 = vmatprep.subr.mxu0 0.0
    %107 = vmatpush1.msra.mxu0 0.0
    %108 = vmatprep.subr.mxu0 0.0
    %109 = vmatpush1.msra.mxu0 0.0
    %110 = vmatprep.subr.mxu0 0.0
    %111 = vmatpush1.msra.mxu0 0.0
    %112 = vmatprep.subr.mxu0 0.0
    %113 = vmatpush1.msra.mxu0 0.0
    %114 = vmatprep.subr.mxu0 0.0
    %115 = vmatpush1.msra.mxu0 0.0
    %116 = vmatprep.subr.mxu0 0.0
    %117 = vmatpush1.msra.mxu0 0.0
    %118 = vmatprep.subr.mxu0 0.0
    %119 = vmatpush1.msra.mxu0 0.0
    %120 = vmatprep.subr.mxu0 0.0
    %121 = vmatpush1.msra.mxu0 0.0
    %122 = vmatprep.subr.mxu0 0.0
    %123 = vmatpush1.msra.mxu0 0.0
    %124 = vmatprep.subr.mxu0 0.0
    %125 = vmatpush1.msra.mxu0 0.0
    %126 = vmatprep.subr.mxu0 0.0
    %127 = vmatpush1.msra.mxu0 0.0
    %128 = vmatprep.subr.mxu0 0.0
    %129 = vmatpush1.msra.mxu0 0.0
    %130 = vmatprep.subr.mxu0 0.0
    %131 = vmatpush1.msra.mxu0 0.0
    %132 = vmatprep.mubr.f32.mxu0 0.0
    %133 = vmatmul.mubr.f32.gmra.mrb[0].mxu0 %v43
    %v134 = vpop.f32.mrb[0].mxu0
    %v135 = vadd.f32 %v66, %v134
    %v136 = vpop.f32.mrb[0].mxu0
    %137 = vmatprep.mubr.f32.mxu0 0.0
    %138 = vmatmul.mubr.f32.gmra.mrb[0].mxu0 %v44
    %v139 = vpop.f32.mrb[0].mxu0
    %v140 = vadd.f32 %v66, %v139
    %v141 = vpop.f32.mrb[0].mxu0
    %142 = vdwg.mxu0
    %143 = vst [vmem:[#allocation7] sm:$0xff] %v135
    %144 = vst [vmem:[#allocation7 + $0x8] sm:$0xff] %v140
    // Predicated region
    $region22: #{tpu_custom_call.1} parent=1 // pred_check
      _
    $region23: #{tpu_custom_call.1} parent=1 // pred_check_branch
      %146 = sbr.rel (0) target = $region25
    $region24: #{tpu_custom_call.1} parent=1 // pred_region
      %s148 = ssub.s32 256, 256
      %149 = vsyncadd [#allocation4], %s148
      %s150 = sshll.u32 [#allocation7], 4
      %s151 = int_to_ptr.vmem [resolvable:$true] %s150
      %156 = dma.vmem_to_hbm [thread:$0]  %s151, 256, %s3, [#allocation4], 128, 128, 8
    $region25: #{tpu_custom_call.1} parent=1 // pred_fallthru
      _
    // Predicated region
    $region26: #{tpu_custom_call.1} parent=1 // pred_check
      _
    $region27: #{tpu_custom_call.1} parent=1 // pred_check_branch
      %158 = sbr.rel (0) target = $region29
    $region28: #{tpu_custom_call.1} parent=1 // pred_region
      %159 = dma.done [#allocation4], 256
    $region29: #{tpu_custom_call.1} parent=1 // pred_fallthru
      _
    %160 = vsyncpa [#allocation3], 1
    %161 = vsyncpa [#allocation6], 1
    %162 = vsyncpa [#allocation4], 1

</llo_original>
